<compile_context>
chip_gen: v7x
topology: tpu7x:2x2x1
jax: 0.10.0
libtpu: 0.0.40
codegen_flags: <defaults>
</compile_context>

<pallas_src>
import functools

import jax
import jax.numpy as jnp
from jax.experimental import pallas as pl
from jax.experimental.pallas import tpu as pltpu

IN_FEATURES = 28 * 28       # 784
OUT_FEATURES = 100
OUT_PADDED = 128            # lane-dense output tile (multiple of 128)
TAU = 2.0                   # tau argument of VPR.__init__


def _vpr_kernel(x_ref, wt_ref, spike_ref, *, tau):
    # x_ref:     (1, 784)   f32  (cast to bf16 for the MXU, trivial VPU cost)
    # wt_ref:    (784, 128)  bf16 (pre-transposed, N zero-padded to 128)
    # spike_ref: (1, 128)    f32
    x = x_ref[...].astype(jnp.bfloat16)
    h = jnp.dot(x, wt_ref[...], preferred_element_type=jnp.float32)
    # Single-step LIF from v=0 (spikingjelly LIFNode, decay_input=True, v_reset=0,
    # v_threshold=1):  v = h / tau ; spike = (v >= 1)   <=>   spike = (h >= tau)
    spike_ref[...] = (h >= tau).astype(spike_ref.dtype)


def prepare_weight(weight):
    """One-time parameter prep (NOT in the per-call hot path).

    weight: (100, 784) nn.Linear weight (bias=False).
    Returns (784, 128) bf16: transposed and zero-padded along N to 128 lanes.
    """
    w_t = jnp.transpose(weight).astype(jnp.bfloat16)               # (784, 100)
    return jnp.pad(w_t, ((0, 0), (0, OUT_PADDED - OUT_FEATURES)))  # (784, 128)


@functools.partial(jax.jit, static_argnames=("tau",))
def vpr_forward(x, w_prepared, tau=TAU):
    """x: any shape with 784 total elements (e.g. NCHW (1, 1, 28, 28)).
    w_prepared: output of prepare_weight().  Returns f32 spikes of shape (100,)."""
    x_flat = x.reshape(1, IN_FEATURES).astype(jnp.float32)   # Flatten(start_dim=0)

    kernel = functools.partial(_vpr_kernel, tau=float(tau))

    spike_padded = pl.pallas_call(
        kernel,
        out_shape=jax.ShapeDtypeStruct((1, OUT_PADDED), jnp.float32),
        in_specs=[
            pl.BlockSpec(memory_space=pltpu.MemorySpace.VMEM),
            pl.BlockSpec(memory_space=pltpu.MemorySpace.VMEM),
        ],
        out_specs=pl.BlockSpec(memory_space=pltpu.MemorySpace.VMEM),
    )(x_flat, w_prepared)

    return spike_padded[0, :OUT_FEATURES]


if __name__ == "__main__":
    key = jax.random.PRNGKey(0)
    kx, kw = jax.random.split(key)

    # Input: NCHW image whose flatten has exactly 28*28 elements (scaled so a
    # healthy fraction of neurons actually cross the LIF threshold).
    x = 5.0 * jax.random.normal(kx, (1, 1, 28, 28), dtype=jnp.float32)

    # Deterministic Linear(784, 100, bias=False) weight (uniform, PyTorch-like bound).
    bound = 1.0 / (IN_FEATURES ** 0.5)
    weight = jax.random.uniform(
        kw, (OUT_FEATURES, IN_FEATURES), minval=-bound, maxval=bound, dtype=jnp.float32
    )

    w_prep = jax.block_until_ready(prepare_weight(weight))  # one-time prep

    spikes = vpr_forward(x, w_prep, tau=TAU)
    spikes = jax.block_until_ready(spikes)

    # Pure-JAX reference with the same numerics (bf16 operands, f32 accumulate).
    x_bf = x.reshape(1, IN_FEATURES).astype(jnp.bfloat16)
    w_bf = jnp.transpose(weight).astype(jnp.bfloat16)
    h_ref = jnp.dot(x_bf, w_bf, preferred_element_type=jnp.float32)[0]
    spikes_ref = (h_ref >= TAU).astype(jnp.float32)

    assert spikes.shape == (OUT_FEATURES,)
    assert bool(jnp.all(spikes == spikes_ref)), "spike mismatch vs reference"

    print("KERNEL_OK")
</pallas_src>

<mosaic_0001>
module attributes {stable_mosaic.version = 11 : i64} {
  func.func @_vpr_kernel(%arg0: memref<1x784xf32, #tpu.memory_space<vmem>>, %arg1: memref<784x128xbf16, #tpu.memory_space<vmem>>, %arg2: memref<1x128xf32, #tpu.memory_space<vmem>>) attributes {dimension_semantics = [], scalar_prefetch = 0 : i64, scratch_operands = 0 : i64, tpu.core_type = #tpu.core_type<tc>} {
    %c0 = arith.constant 0 : index
    %c0_0 = arith.constant 0 : index
    %0 = vector.load %arg0[%c0, %c0_0] : memref<1x784xf32, #tpu.memory_space<vmem>>, vector<1x784xf32>
    %1 = arith.truncf %0 : vector<1x784xf32> to vector<1x784xbf16>
    %c0_1 = arith.constant 0 : index
    %c0_2 = arith.constant 0 : index
    %2 = vector.load %arg1[%c0_1, %c0_2] : memref<784x128xbf16, #tpu.memory_space<vmem>>, vector<784x128xbf16>
    %cst = arith.constant dense<0.000000e+00> : vector<1x128xf32>
    %3 = tpu.matmul %1, %2, %cst {dimension_numbers = #tpu.dot_dimension_numbers<[1], [0], [0], [1], [0, 0, 1, 1], [], []>} : vector<1x784xbf16>, vector<784x128xbf16>, vector<1x128xf32> -> vector<1x128xf32>
    %cst_3 = arith.constant 2.000000e+00 : f32
    %4 = vector.broadcast %cst_3 : f32 to vector<1x128xf32>
    %5 = arith.cmpf oge, %3, %4 : vector<1x128xf32>
    %6 = arith.extui %5 : vector<1x128xi1> to vector<1x128xi32>
    %7 = arith.sitofp %6 : vector<1x128xi32> to vector<1x128xf32>
    %c0_4 = arith.constant 0 : index
    %c0_5 = arith.constant 0 : index
    %8 = vector.load %arg2[%c0_4, %c0_5] : memref<1x128xf32, #tpu.memory_space<vmem>>, vector<1x128xf32>
    tpu.vector_store %arg2[%c0_4, %c0_5], %7 {strides = array<i32>} : memref<1x128xf32, #tpu.memory_space<vmem>>, vector<1x128xf32>,
    return
  }
}

</mosaic_0001>

<llo_original>
// kernel: vpr_forward.1
$region0: #{vpr_forward.1}
  #allocation0 [shape = 'u32[]', space=smem, size = 0x4, offset = 0x4, fixed_abs, tag = 'smem constant byte address 0x4 - core index']
  #allocation1 [shape = 'u32[144,128]{1,0:T(1,128)}', space=vmem, size = 0x12000, scoped, tag = 'internal scratch']
  %s0 = inlined_call_operand.vmem [shape: f32[1,784], index: 0, kind: input, shape index: {}]
  %s1 = inlined_call_operand.hbm [shape: bf16[784,128], index: 1, kind: input, shape index: {}]
  %s2 = inlined_call_operand.vmem [shape: f32[1,128], index: 2, kind: output, shape index: {}]
  %s3 = sld [smem:[#allocation0]]
  $region22: #{vpr_forward.1} parent=0
    _
  %s5 = ssub.s32 1, %s3
  %s6 = scalar_select 0, %s5, %s3
  $region1: #{vpr_forward.1} parent=0
    #allocation2 [shape = 'u8[200704]{0}', space=vmem, size = 0x31000, scoped, tag = 'input window, operand 1, single buffered']
    #allocation3 [shape = 's32[1]{0}', space=sflag, size = 0x4, scoped, tag = 'scoped memory for vpr_forward.1']
    %7 = vsyncpa [#allocation3], 0
    // Predicated region
    $region2: #{vpr_forward.1} parent=1 // pred_check
      _
    $region3: #{vpr_forward.1} parent=1 // pred_check_branch
      %9 = sbr.rel (0) target = $region5
    $region4: #{vpr_forward.1} parent=1 // pred_region
      _
    $region5: #{vpr_forward.1} parent=1 // pred_fallthru
      _
    // Predicated region
    $region6: #{vpr_forward.1} parent=1 // pred_check
      _
    $region7: #{vpr_forward.1} parent=1 // pred_check_branch
      %11 = sbr.rel (0) target = $region9
    $region8: #{vpr_forward.1} parent=1 // pred_region
      %s13 = ssub.s32 6272, 6272
      %14 = vsyncadd [#allocation3], %s13
      %s15 = sshll.u32 [#allocation2], 4
      %s16 = int_to_ptr.vmem [resolvable:$true] %s15
      %21 = dma.hbm_to_vmem [thread:$0]  %s1, 6272, %s16, [#allocation3], 64, 64, 4
    $region9: #{vpr_forward.1} parent=1 // pred_fallthru
      _
    // Predicated region
    $region10: #{vpr_forward.1} parent=1 // pred_check
      _
    $region11: #{vpr_forward.1} parent=1 // pred_check_branch
      %23 = sbr.rel (0) target = $region13
    $region12: #{vpr_forward.1} parent=1 // pred_region
      %24 = dma.done [#allocation3], 6272
    $region13: #{vpr_forward.1} parent=1 // pred_fallthru
      _
    %v26 = vld [vmem:[%s0] sm:$0x7f]
    %v28 = vlaneseq
    %v29 = vshrl.u32 %v28, 7
    %v30 = vsub.s32 0, %v29
    %v31 = vrot.slane %v26, %v30
    %v32 = vlaneseq
    %v33 = vshrl.u32 %v32, 7
    %v34 = vsub.s32 1, %v33
    %v35 = vrot.slane %v26, %v34
    %v36 = vlaneseq
    %v37 = vshrl.u32 %v36, 7
    %v38 = vsub.s32 2, %v37
    %v39 = vrot.slane %v26, %v38
    %v40 = vlaneseq
    %v41 = vshrl.u32 %v40, 7
    %v42 = vsub.s32 3, %v41
    %v43 = vrot.slane %v26, %v42
    %v44 = vlaneseq
    %v45 = vshrl.u32 %v44, 7
    %v46 = vsub.s32 4, %v45
    %v47 = vrot.slane %v26, %v46
    %v48 = vlaneseq
    %v49 = vshrl.u32 %v48, 7
    %v50 = vsub.s32 5, %v49
    %v51 = vrot.slane %v26, %v50
    %v52 = vlaneseq
    %v53 = vshrl.u32 %v52, 7
    %v54 = vsub.s32 6, %v53
    %v55 = vrot.slane %v26, %v54
    %v63 = vpack.c.bf16 %v31, %v31
    %v64 = vpack.c.bf16 %v35, %v35
    %v65 = vpack.c.bf16 %v39, %v39
    %v66 = vpack.c.bf16 %v43, %v43
    %v67 = vpack.c.bf16 %v47, %v47
    %v68 = vpack.c.bf16 %v51, %v51
    %v69 = vpack.c.bf16 %v55, %v55
    %v70 = vld [vmem:[#allocation2] sm:$0xf]
    %v71 = vld [vmem:[#allocation2 + $0x4] sm:$0xf]
    %v72 = vld [vmem:[#allocation2 + $0x8] sm:$0xf]
    %v73 = vld [vmem:[#allocation2 + $0xc] sm:$0xf]
    %v74 = vld [vmem:[#allocation2 + $0x10] sm:$0xf]
    %v75 = vld [vmem:[#allocation2 + $0x14] sm:$0xf]
    %v76 = vld [vmem:[#allocation2 + $0x18] sm:$0xf]
    %v77 = vld [vmem:[#allocation2 + $0x1c] sm:$0xf]
    %v78 = vld [vmem:[#allocation2 + $0x20] sm:$0xf]
    %v79 = vld [vmem:[#allocation2 + $0x24] sm:$0xf]
    %v80 = vld [vmem:[#allocation2 + $0x28] sm:$0xf]
    %v81 = vld [vmem:[#allocation2 + $0x2c] sm:$0xf]
    %v82 = vld [vmem:[#allocation2 + $0x30] sm:$0xf]
    %v83 = vld [vmem:[#allocation2 + $0x34] sm:$0xf]
    %v84 = vld [vmem:[#allocation2 + $0x38] sm:$0xf]
    %v85 = vld [vmem:[#allocation2 + $0x3c] sm:$0xf]
    %v86 = vld [vmem:[#allocation2 + $0x40] sm:$0xf]
    %v87 = vld [vmem:[#allocation2 + $0x44] sm:$0xf]
    %v88 = vld [vmem:[#allocation2 + $0x48] sm:$0xf]
    %v89 = vld [vmem:[#allocation2 + $0x4c] sm:$0xf]
    %v90 = vld [vmem:[#allocation2 + $0x50] sm:$0xf]
    %v91 = vld [vmem:[#allocation2 + $0x54] sm:$0xf]
    %v92 = vld [vmem:[#allocation2 + $0x58] sm:$0xf]
    %v93 = vld [vmem:[#allocation2 + $0x5c] sm:$0xf]
    %v94 = vld [vmem:[#allocation2 + $0x60] sm:$0xf]
    %v95 = vld [vmem:[#allocation2 + $0x64] sm:$0xf]
    %v96 = vld [vmem:[#allocation2 + $0x68] sm:$0xf]
    %v97 = vld [vmem:[#allocation2 + $0x6c] sm:$0xf]
    %v98 = vld [vmem:[#allocation2 + $0x70] sm:$0xf]
    %v99 = vld [vmem:[#allocation2 + $0x74] sm:$0xf]
    %v100 = vld [vmem:[#allocation2 + $0x78] sm:$0xf]
    %v101 = vld [vmem:[#allocation2 + $0x7c] sm:$0xf]
    %v102 = vld [vmem:[#allocation2 + $0x80] sm:$0xf]
    %v103 = vld [vmem:[#allocation2 + $0x84] sm:$0xf]
    %v104 = vld [vmem:[#allocation2 + $0x88] sm:$0xf]
    %v105 = vld [vmem:[#allocation2 + $0x8c] sm:$0xf]
    %v106 = vld [vmem:[#allocation2 + $0x90] sm:$0xf]
    %v107 = vld [vmem:[#allocation2 + $0x94] sm:$0xf]
    %v108 = vld [vmem:[#allocation2 + $0x98] sm:$0xf]
    %v109 = vld [vmem:[#allocation2 + $0x9c] sm:$0xf]
    %v110 = vld [vmem:[#allocation2 + $0xa0] sm:$0xf]
    %v111 = vld [vmem:[#allocation2 + $0xa4] sm:$0xf]
    %v112 = vld [vmem:[#allocation2 + $0xa8] sm:$0xf]
    %v113 = vld [vmem:[#allocation2 + $0xac] sm:$0xf]
    %v114 = vld [vmem:[#allocation2 + $0xb0] sm:$0xf]
    %v115 = vld [vmem:[#allocation2 + $0xb4] sm:$0xf]
    %v116 = vld [vmem:[#allocation2 + $0xb8] sm:$0xf]
    %v117 = vld [vmem:[#allocation2 + $0xbc] sm:$0xf]
    %v118 = vld [vmem:[#allocation2 + $0xc0] sm:$0xf]
    %v119 = vld [vmem:[#allocation2 + $0xc4] sm:$0xf]
    %v120 = vld [vmem:[#allocation2 + $0xc8] sm:$0xf]
    %v121 = vld [vmem:[#allocation2 + $0xcc] sm:$0xf]
    %v122 = vld [vmem:[#allocation2 + $0xd0] sm:$0xf]
    %v123 = vld [vmem:[#allocation2 + $0xd4] sm:$0xf]
    %v124 = vld [vmem:[#allocation2 + $0xd8] sm:$0xf]
    %v125 = vld [vmem:[#allocation2 + $0xdc] sm:$0xf]
    %v126 = vld [vmem:[#allocation2 + $0xe0] sm:$0xf]
    %v127 = vld [vmem:[#allocation2 + $0xe4] sm:$0xf]
    %v128 = vld [vmem:[#allocation2 + $0xe8] sm:$0xf]
    %v129 = vld [vmem:[#allocation2 + $0xec] sm:$0xf]
    %v130 = vld [vmem:[#allocation2 + $0xf0] sm:$0xf]
    %v131 = vld [vmem:[#allocation2 + $0xf4] sm:$0xf]
    %v132 = vld [vmem:[#allocation2 + $0xf8] sm:$0xf]
    %v133 = vld [vmem:[#allocation2 + $0xfc] sm:$0xf]
    %v134 = vld [vmem:[#allocation2 + $0x100] sm:$0xf]
    %v135 = vld [vmem:[#allocation2 + $0x104] sm:$0xf]
    %v136 = vld [vmem:[#allocation2 + $0x108] sm:$0xf]
    %v137 = vld [vmem:[#allocation2 + $0x10c] sm:$0xf]
    %v138 = vld [vmem:[#allocation2 + $0x110] sm:$0xf]
    %v139 = vld [vmem:[#allocation2 + $0x114] sm:$0xf]
    %v140 = vld [vmem:[#allocation2 + $0x118] sm:$0xf]
    %v141 = vld [vmem:[#allocation2 + $0x11c] sm:$0xf]
    %v142 = vld [vmem:[#allocation2 + $0x120] sm:$0xf]
    %v143 = vld [vmem:[#allocation2 + $0x124] sm:$0xf]
    %v144 = vld [vmem:[#allocation2 + $0x128] sm:$0xf]
    %v145 = vld [vmem:[#allocation2 + $0x12c] sm:$0xf]
    %v146 = vld [vmem:[#allocation2 + $0x130] sm:$0xf]
    %v147 = vld [vmem:[#allocation2 + $0x134] sm:$0xf]
    %v148 = vld [vmem:[#allocation2 + $0x138] sm:$0xf]
    %v149 = vld [vmem:[#allocation2 + $0x13c] sm:$0xf]
    %v150 = vld [vmem:[#allocation2 + $0x140] sm:$0xf]
    %v151 = vld [vmem:[#allocation2 + $0x144] sm:$0xf]
    %v152 = vld [vmem:[#allocation2 + $0x148] sm:$0xf]
    %v153 = vld [vmem:[#allocation2 + $0x14c] sm:$0xf]
    %v154 = vld [vmem:[#allocation2 + $0x150] sm:$0xf]
    %v155 = vld [vmem:[#allocation2 + $0x154] sm:$0xf]
    %v156 = vld [vmem:[#allocation2 + $0x158] sm:$0xf]
    %v157 = vld [vmem:[#allocation2 + $0x15c] sm:$0xf]
    %v158 = vld [vmem:[#allocation2 + $0x160] sm:$0xf]
    %v159 = vld [vmem:[#allocation2 + $0x164] sm:$0xf]
    %v160 = vld [vmem:[#allocation2 + $0x168] sm:$0xf]
    %v161 = vld [vmem:[#allocation2 + $0x16c] sm:$0xf]
    %v162 = vld [vmem:[#allocation2 + $0x170] sm:$0xf]
    %v163 = vld [vmem:[#allocation2 + $0x174] sm:$0xf]
    %v164 = vld [vmem:[#allocation2 + $0x178] sm:$0xf]
    %v165 = vld [vmem:[#allocation2 + $0x17c] sm:$0xf]
    %v166 = vld [vmem:[#allocation2 + $0x180] sm:$0xf]
    %v167 = vld [vmem:[#allocation2 + $0x184] sm:$0xf]
    %v266 = vunpack.c.l.b16 %v70
    %v267 = vunpack.c.l.b16 %v71
    %v268 = vunpack.c.l.b16 %v72
    %v269 = vunpack.c.l.b16 %v73
    %v270 = vunpack.c.l.b16 %v74
    %v271 = vunpack.c.l.b16 %v75
    %v272 = vunpack.c.l.b16 %v76
    %v273 = vunpack.c.l.b16 %v77
    %v274 = vunpack.c.l.b16 %v78
    %v275 = vunpack.c.l.b16 %v79
    %v276 = vunpack.c.l.b16 %v80
    %v277 = vunpack.c.l.b16 %v81
    %v278 = vunpack.c.l.b16 %v82
    %v279 = vunpack.c.l.b16 %v83
    %v280 = vunpack.c.l.b16 %v84
    %v281 = vunpack.c.l.b16 %v85
    %v282 = vunpack.c.l.b16 %v86
    %v283 = vunpack.c.l.b16 %v87
    %v284 = vunpack.c.l.b16 %v88
    %v285 = vunpack.c.l.b16 %v89
    %v286 = vunpack.c.l.b16 %v90
    %v287 = vunpack.c.l.b16 %v91
    %v288 = vunpack.c.l.b16 %v92
    %v289 = vunpack.c.l.b16 %v93
    %v290 = vunpack.c.l.b16 %v94
    %v291 = vunpack.c.l.b16 %v95
    %v292 = vunpack.c.l.b16 %v96
    %v293 = vunpack.c.l.b16 %v97
    %v294 = vunpack.c.l.b16 %v98
    %v295 = vunpack.c.l.b16 %v99
    %v296 = vunpack.c.l.b16 %v100
    %v297 = vunpack.c.l.b16 %v101
    %v298 = vunpack.c.l.b16 %v102
    %v299 = vunpack.c.l.b16 %v103
    %v300 = vunpack.c.l.b16 %v104
    %v301 = vunpack.c.l.b16 %v105
    %v302 = vunpack.c.l.b16 %v106
    %v303 = vunpack.c.l.b16 %v107
    %v304 = vunpack.c.l.b16 %v108
    %v305 = vunpack.c.l.b16 %v109
    %v306 = vunpack.c.l.b16 %v110
    %v307 = vunpack.c.l.b16 %v111
    %v308 = vunpack.c.l.b16 %v112
    %v309 = vunpack.c.l.b16 %v113
    %v310 = vunpack.c.l.b16 %v114
    %v311 = vunpack.c.l.b16 %v115
    %v312 = vunpack.c.l.b16 %v116
    %v313 = vunpack.c.l.b16 %v117
    %v314 = vunpack.c.l.b16 %v118
    %v315 = vunpack.c.l.b16 %v119
    %v316 = vunpack.c.l.b16 %v120
    %v317 = vunpack.c.l.b16 %v121
    %v318 = vunpack.c.l.b16 %v122
    %v319 = vunpack.c.l.b16 %v123
    %v320 = vunpack.c.l.b16 %v124
    %v321 = vunpack.c.l.b16 %v125
    %v322 = vunpack.c.l.b16 %v126
    %v323 = vunpack.c.l.b16 %v127
    %v324 = vunpack.c.l.b16 %v128
    %v325 = vunpack.c.l.b16 %v129
    %v326 = vunpack.c.l.b16 %v130
    %v327 = vunpack.c.l.b16 %v131
    %v328 = vunpack.c.l.b16 %v132
    %v329 = vunpack.c.l.b16 %v133
    %v330 = vunpack.c.l.b16 %v134
    %v331 = vunpack.c.l.b16 %v135
    %v332 = vunpack.c.l.b16 %v136
    %v333 = vunpack.c.l.b16 %v137
    %v334 = vunpack.c.l.b16 %v138
    %v335 = vunpack.c.l.b16 %v139
    %v336 = vunpack.c.l.b16 %v140
    %v337 = vunpack.c.l.b16 %v141
    %v338 = vunpack.c.l.b16 %v142
    %v339 = vunpack.c.l.b16 %v143
    %v340 = vunpack.c.l.b16 %v144
    %v341 = vunpack.c.l.b16 %v145
    %v342 = vunpack.c.l.b16 %v146
    %v343 = vunpack.c.l.b16 %v147
    %v344 = vunpack.c.l.b16 %v148
    %v345 = vunpack.c.l.b16 %v149
    %v346 = vunpack.c.l.b16 %v150
    %v347 = vunpack.c.l.b16 %v151
    %v348 = vunpack.c.l.b16 %v152
    %v349 = vunpack.c.l.b16 %v153
    %v350 = vunpack.c.l.b16 %v154
    %v351 = vunpack.c.l.b16 %v155
    %v352 = vunpack.c.l.b16 %v156
    %v353 = vunpack.c.l.b16 %v157
    %v354 = vunpack.c.l.b16 %v158
    %v355 = vunpack.c.l.b16 %v159
    %v356 = vunpack.c.l.b16 %v160
    %v357 = vunpack.c.l.b16 %v161
    %v358 = vunpack.c.l.b16 %v162
    %v359 = vunpack.c.l.b16 %v163
    %v360 = vunpack.c.l.b16 %v164
    %v361 = vunpack.c.l.b16 %v165
    %v362 = vunpack.c.l.b16 %v166
    %v363 = vunpack.c.l.b16 %v167
    %v364 = vpack.c.b16 %v267, %v266
    %v365 = vpack.c.b16 %v269, %v268
    %v366 = vpack.c.b16 %v271, %v270
    %v367 = vpack.c.b16 %v273, %v272
    %v368 = vpack.c.b16 %v275, %v274
    %v369 = vpack.c.b16 %v277, %v276
    %v370 = vpack.c.b16 %v279, %v278
    %v371 = vpack.c.b16 %v281, %v280
    %v372 = vpack.c.b16 %v283, %v282
    %v373 = vpack.c.b16 %v285, %v284
    %v374 = vpack.c.b16 %v287, %v286
    %v375 = vpack.c.b16 %v289, %v288
    %v376 = vpack.c.b16 %v291, %v290
    %v377 = vpack.c.b16 %v293, %v292
    %v378 = vpack.c.b16 %v295, %v294
    %v379 = vpack.c.b16 %v297, %v296
    %v380 = vpack.c.b16 %v299, %v298
    %v381 = vpack.c.b16 %v301, %v300
    %v382 = vpack.c.b16 %v303, %v302
    %v383 = vpack.c.b16 %v305, %v304
    %v384 = vpack.c.b16 %v307, %v306
    %v385 = vpack.c.b16 %v309, %v308
    %v386 = vpack.c.b16 %v311, %v310
    %v387 = vpack.c.b16 %v313, %v312
    %v388 = vpack.c.b16 %v315, %v314
    %v389 = vpack.c.b16 %v317, %v316
    %v390 = vpack.c.b16 %v319, %v318
    %v391 = vpack.c.b16 %v321, %v320
    %v392 = vpack.c.b16 %v323, %v322
    %v393 = vpack.c.b16 %v325, %v324
    %v394 = vpack.c.b16 %v327, %v326
    %v395 = vpack.c.b16 %v329, %v328
    %v396 = vpack.c.b16 %v331, %v330
    %v397 = vpack.c.b16 %v333, %v332
    %v398 = vpack.c.b16 %v335, %v334
    %v399 = vpack.c.b16 %v337, %v336
    %v400 = vpack.c.b16 %v339, %v338
    %v401 = vpack.c.b16 %v341, %v340
    %v402 = vpack.c.b16 %v343, %v342
    %v403 = vpack.c.b16 %v345, %v344
    %v404 = vpack.c.b16 %v347, %v346
    %v405 = vpack.c.b16 %v349, %v348
    %v406 = vpack.c.b16 %v351, %v350
    %v407 = vpack.c.b16 %v353, %v352
    %v408 = vpack.c.b16 %v355, %v354
    %v409 = vpack.c.b16 %v357, %v356
    %v410 = vpack.c.b16 %v359, %v358
    %v411 = vpack.c.b16 %v361, %v360
    %v412 = vpack.c.b16 %v363, %v362
    %vm462 = vcmask 130048
    %v464 = vsel %vm462, %v69, 0
    %466 = vmatprep.subr.bf16.mxu0 0
    %467 = vmatpush1.bf16.msra.mxu0 %v364
    %468 = vmatprep.subr.bf16.mxu0 0
    %469 = vmatpush1.bf16.msra.mxu0 %v365
    %470 = vmatprep.subr.bf16.mxu0 0
    %471 = vmatpush1.bf16.msra.mxu0 %v366
    %472 = vmatprep.subr.bf16.mxu0 0
    %473 = vmatpush1.bf16.msra.mxu0 %v367
    %474 = vmatprep.subr.bf16.mxu0 0
    %475 = vmatpush1.bf16.msra.mxu0 %v368
    %476 = vmatprep.subr.bf16.mxu0 0
    %477 = vmatpush1.bf16.msra.mxu0 %v369
    %478 = vmatprep.subr.bf16.mxu0 0
    %479 = vmatpush1.bf16.msra.mxu0 %v370
    %480 = vmatprep.subr.bf16.mxu0 0
    %481 = vmatpush1.bf16.msra.mxu0 %v371
    %482 = vmatprep.subr.bf16.mxu0 0
    %483 = vmatpush1.bf16.msra.mxu0 %v372
    %484 = vmatprep.subr.bf16.mxu0 0
    %485 = vmatpush1.bf16.msra.mxu0 %v373
    %486 = vmatprep.subr.bf16.mxu0 0
    %487 = vmatpush1.bf16.msra.mxu0 %v374
    %488 = vmatprep.subr.bf16.mxu0 0
    %489 = vmatpush1.bf16.msra.mxu0 %v375
    %490 = vmatprep.subr.bf16.mxu0 0
    %491 = vmatpush1.bf16.msra.mxu0 %v376
    %492 = vmatprep.subr.bf16.mxu0 0
    %493 = vmatpush1.bf16.msra.mxu0 %v377
    %494 = vmatprep.subr.bf16.mxu0 0
    %495 = vmatpush1.bf16.msra.mxu0 %v378
    %496 = vmatprep.subr.bf16.mxu0 0
    %497 = vmatpush1.bf16.msra.mxu0 %v379
    %498 = vmatprep.mubr.bf16.mxu0 %v64
    %499 = vmatmul.mubr.bf16.gmra.mrb[0].mxu0 %v63
    %v500 = vpop.f32.mrb[0].mxu0
    %v501 = vadd.f32 0.0, %v500
    %v502 = vpop.f32.mrb[0].mxu0
    %v503 = vpop.f32.mrb[0].mxu0
    %v504 = vpop.f32.mrb[0].mxu0
    %505 = vdwg.mxu0
    %506 = vmatprep.subr.bf16.mxu0 0
    %507 = vmatpush1.bf16.msra.mxu0 %v380
    %508 = vmatprep.subr.bf16.mxu0 0
    %509 = vmatpush1.bf16.msra.mxu0 %v381
    %510 = vmatprep.subr.bf16.mxu0 0
    %511 = vmatpush1.bf16.msra.mxu0 %v382
    %512 = vmatprep.subr.bf16.mxu0 0
    %513 = vmatpush1.bf16.msra.mxu0 %v383
    %514 = vmatprep.subr.bf16.mxu0 0
    %515 = vmatpush1.bf16.msra.mxu0 %v384
    %516 = vmatprep.subr.bf16.mxu0 0
    %517 = vmatpush1.bf16.msra.mxu0 %v385
    %518 = vmatprep.subr.bf16.mxu0 0
    %519 = vmatpush1.bf16.msra.mxu0 %v386
    %520 = vmatprep.subr.bf16.mxu0 0
    %521 = vmatpush1.bf16.msra.mxu0 %v387
    %522 = vmatprep.subr.bf16.mxu0 0
    %523 = vmatpush1.bf16.msra.mxu0 %v388
    %524 = vmatprep.subr.bf16.mxu0 0
    %525 = vmatpush1.bf16.msra.mxu0 %v389
    %526 = vmatprep.subr.bf16.mxu0 0
    %527 = vmatpush1.bf16.msra.mxu0 %v390
    %528 = vmatprep.subr.bf16.mxu0 0
    %529 = vmatpush1.bf16.msra.mxu0 %v391
    %530 = vmatprep.subr.bf16.mxu0 0
    %531 = vmatpush1.bf16.msra.mxu0 %v392
    %532 = vmatprep.subr.bf16.mxu0 0
    %533 = vmatpush1.bf16.msra.mxu0 %v393
    %534 = vmatprep.subr.bf16.mxu0 0
    %535 = vmatpush1.bf16.msra.mxu0 %v394
    %536 = vmatprep.subr.bf16.mxu0 0
    %537 = vmatpush1.bf16.msra.mxu0 %v395
    %538 = vmatprep.mubr.bf16.mxu0 %v66
    %539 = vmatmul.mubr.bf16.gmra.mrb[0].mxu0 %v65
    %v540 = vpop.f32.mrb[0].mxu0
    %v541 = vadd.f32 %v501, %v540
    %v542 = vpop.f32.mrb[0].mxu0
    %v543 = vpop.f32.mrb[0].mxu0
    %v544 = vpop.f32.mrb[0].mxu0
    %545 = vdwg.mxu0
    %546 = vmatprep.subr.bf16.mxu0 0
    %547 = vmatpush1.bf16.msra.mxu0 %v396
    %548 = vmatprep.subr.bf16.mxu0 0
    %549 = vmatpush1.bf16.msra.mxu0 %v397
    %550 = vmatprep.subr.bf16.mxu0 0
    %551 = vmatpush1.bf16.msra.mxu0 %v398
    %552 = vmatprep.subr.bf16.mxu0 0
    %553 = vmatpush1.bf16.msra.mxu0 %v399
    %554 = vmatprep.subr.bf16.mxu0 0
    %555 = vmatpush1.bf16.msra.mxu0 %v400
    %556 = vmatprep.subr.bf16.mxu0 0
    %557 = vmatpush1.bf16.msra.mxu0 %v401
    %558 = vmatprep.subr.bf16.mxu0 0
    %559 = vmatpush1.bf16.msra.mxu0 %v402
    %560 = vmatprep.subr.bf16.mxu0 0
    %561 = vmatpush1.bf16.msra.mxu0 %v403
    %562 = vmatprep.subr.bf16.mxu0 0
    %563 = vmatpush1.bf16.msra.mxu0 %v404
    %564 = vmatprep.subr.bf16.mxu0 0
    %565 = vmatpush1.bf16.msra.mxu0 %v405
    %566 = vmatprep.subr.bf16.mxu0 0
    %567 = vmatpush1.bf16.msra.mxu0 %v406
    %568 = vmatprep.subr.bf16.mxu0 0
    %569 = vmatpush1.bf16.msra.mxu0 %v407
    %570 = vmatprep.subr.bf16.mxu0 0
    %571 = vmatpush1.bf16.msra.mxu0 %v408
    %572 = vmatprep.subr.bf16.mxu0 0
    %573 = vmatpush1.bf16.msra.mxu0 %v409
    %574 = vmatprep.subr.bf16.mxu0 0
    %575 = vmatpush1.bf16.msra.mxu0 %v410
    %576 = vmatprep.subr.bf16.mxu0 0
    %577 = vmatpush1.bf16.msra.mxu0 %v411
    %578 = vmatprep.mubr.bf16.mxu0 %v68
    %579 = vmatmul.mubr.bf16.gmra.mrb[0].mxu0 %v67
    %v580 = vpop.f32.mrb[0].mxu0
    %v581 = vadd.f32 %v541, %v580
    %v582 = vpop.f32.mrb[0].mxu0
    %v583 = vpop.f32.mrb[0].mxu0
    %v584 = vpop.f32.mrb[0].mxu0
    %585 = vdwg.mxu0
    %586 = vmatprep.subr.bf16.mxu0 0
    %587 = vmatpush1.bf16.msra.mxu0 %v412
    %588 = vmatprep.subr.bf16.mxu0 0
    %589 = vmatpush1.bf16.msra.mxu0 0
    %590 = vmatprep.subr.bf16.mxu0 0
    %591 = vmatpush1.bf16.msra.mxu0 0
    %592 = vmatprep.subr.bf16.mxu0 0
    %593 = vmatpush1.bf16.msra.mxu0 0
    %594 = vmatprep.subr.bf16.mxu0 0
    %595 = vmatpush1.bf16.msra.mxu0 0
    %596 = vmatprep.subr.bf16.mxu0 0
    %597 = vmatpush1.bf16.msra.mxu0 0
    %598 = vmatprep.subr.bf16.mxu0 0
    %599 = vmatpush1.bf16.msra.mxu0 0
    %600 = vmatprep.subr.bf16.mxu0 0
    %601 = vmatpush1.bf16.msra.mxu0 0
    %602 = vmatprep.subr.bf16.mxu0 0
    %603 = vmatpush1.bf16.msra.mxu0 0
    %604 = vmatprep.subr.bf16.mxu0 0
    %605 = vmatpush1.bf16.msra.mxu0 0
    %606 = vmatprep.subr.bf16.mxu0 0
    %607 = vmatpush1.bf16.msra.mxu0 0
    %608 = vmatprep.subr.bf16.mxu0 0
    %609 = vmatpush1.bf16.msra.mxu0 0
    %610 = vmatprep.subr.bf16.mxu0 0
    %611 = vmatpush1.bf16.msra.mxu0 0
    %612 = vmatprep.subr.bf16.mxu0 0
    %613 = vmatpush1.bf16.msra.mxu0 0
    %614 = vmatprep.subr.bf16.mxu0 0
    %615 = vmatpush1.bf16.msra.mxu0 0
    %616 = vmatprep.subr.bf16.mxu0 0
    %617 = vmatpush1.bf16.msra.mxu0 0
    %618 = vmatprep.mubr.bf16.mxu0 0
    %619 = vmatmul.mubr.bf16.gmra.mrb[0].mxu0 %v464
    %v620 = vpop.f32.mrb[0].mxu0
    %v621 = vadd.f32 %v581, %v620
    %v622 = vpop.f32.mrb[0].mxu0
    %v623 = vpop.f32.mrb[0].mxu0
    %v624 = vpop.f32.mrb[0].mxu0
    %625 = vdwg.mxu0
    %vm626 = vcmp.ge.f32.partialorder %v621, 2.0
    %v627 = vsel %vm626, 1, 0
    %v628 = vcvt.s32.f32 %v627
    %629 = vst [vmem:[%s2] sm:$0x1] %v628
    // Predicated region
    $region14: #{vpr_forward.1} parent=1 // pred_check
      _
    $region15: #{vpr_forward.1} parent=1 // pred_check_branch
      %631 = sbr.rel (0) target = $region17
    $region16: #{vpr_forward.1} parent=1 // pred_region
      _
    $region17: #{vpr_forward.1} parent=1 // pred_fallthru
      _
    // Predicated region
    $region18: #{vpr_forward.1} parent=1 // pred_check
      _
    $region19: #{vpr_forward.1} parent=1 // pred_check_branch
      %633 = sbr.rel (0) target = $region21
    $region20: #{vpr_forward.1} parent=1 // pred_region
      _
    $region21: #{vpr_forward.1} parent=1 // pred_fallthru
      _
    %634 = vsyncpa [#allocation3], 1

</llo_original>
